<compile_context>
chip_gen: v6e
topology: v6e:2x2x1
jax: 0.10.0
libtpu: 0.0.40
codegen_flags: <defaults>
</compile_context>

<pallas_src>
import jax
import jax.numpy as jnp
from jax.experimental import pallas as pl
from jax.experimental.pallas import tpu as pltpu

# ---- LogicOP configuration (deterministic, set in-script) -------------------
I_IDX, J_IDX = 0, 9
ID = [7, 6, 5, 4, 3, 2, 1, 0, 7, 6, 5, 4, 3, 2, 1, 0]
BIT_I, BIT_J = ID[I_IDX], ID[J_IDX]          # 7, 6
MASK_I, MASK_J = 1 << BIT_I, 1 << BIT_J      # 0x80, 0x40
# f_str == 'torch.logical_and(x_0, x_1)'  ->  f(a, b) = a AND b.


def logic_kernel(x_ref, w_ref, o_ref):
    # x_ref: (tn, tf) integer tile; w_ref: (1, tf) integer tile (sublane-broadcast
    # over batch rows).  (v & (1<<b)) != 0  ==  (v >> b) & 1  for any integer
    # dtype / sign.  Pure VPU elementwise work; the kernel is DMA-bound.
    xb = (x_ref[...] & MASK_I) != 0
    wb = (w_ref[...] & MASK_J) != 0
    o_ref[...] = jnp.logical_and(xb, wb)


def _pick_tile(total, unit, cap):
    """Largest tile <= cap that is a multiple of `unit`, preferring an exact
    divisor of `total`.  Returns `total` itself when it already fits `cap`."""
    if total <= cap:
        return total
    t = max((cap // unit) * unit, unit)
    cand = t
    while cand >= unit:
        if total % cand == 0:
            return cand
        cand -= unit
    return t  # no exact divisor: ragged last block, Pallas masks OOB writes.


def logic_op(x, w, *, vmem_budget_bytes=12 * 1024 * 1024,
             tiny_max_bytes=2 * 1024 * 1024, batch_tile_cap=256):
    """x: (N, C, H, W), w: (1, C, H, W), integer dtype -> bool (N, C, H, W)."""
    N, C, H, W = x.shape
    assert w.shape == (1, C, H, W), (x.shape, w.shape)
    assert jnp.issubdtype(x.dtype, jnp.integer), x.dtype
    assert jnp.issubdtype(w.dtype, jnp.integer), w.dtype
    F = C * H * W

    # Lane-dense flatten: trailing dim C*H*W (a multiple of 128 here) -> full
    # unmasked vst instead of masked stores on a narrow W trailing dim.
    xf = x.reshape(N, F)
    wf = w.reshape(1, F)
    xb_sz = x.dtype.itemsize
    wb_sz = w.dtype.itemsize
    ob_sz = 1  # bool output: one byte per element in HBM

    total_bytes = N * F * xb_sz + F * wb_sz + N * F * ob_sz
    if total_bytes <= tiny_max_bytes:
        # Tiny instance: single grid-less invocation, whole arrays resident in
        # VMEM once (no pipeline prologue, no per-step overhead).
        out = pl.pallas_call(
            logic_kernel,
            out_shape=jax.ShapeDtypeStruct((N, F), jnp.bool_),
        )(xf, wf)
        return out.reshape(N, C, H, W)

    # Large instance: (batch, feature) tiling sized from a VMEM budget with
    # double buffering.  Feature axis is the OUTER grid dim so the (1, tf)
    # w block is reused (not re-fetched) across consecutive batch steps.
    tn = _pick_tile(N, 8, batch_tile_cap)
    per_feat_elem = 2 * (tn * xb_sz + wb_sz + tn * ob_sz)   # double-buffered
    tf_cap = max(128, vmem_budget_bytes // per_feat_elem)
    tf = _pick_tile(F, 128, tf_cap)

    grid = (pl.cdiv(F, tf), pl.cdiv(N, tn))  # (feature outer, batch inner)
    out = pl.pallas_call(
        logic_kernel,
        out_shape=jax.ShapeDtypeStruct((N, F), jnp.bool_),
        grid=grid,
        in_specs=[
            pl.BlockSpec((tn, tf), lambda f, n: (n, f)),   # x tile
            pl.BlockSpec((1, tf), lambda f, n: (0, f)),    # w: indep. of batch
        ],
        out_specs=pl.BlockSpec((tn, tf), lambda f, n: (n, f)),
        compiler_params=pltpu.CompilerParams(
            dimension_semantics=("parallel", "parallel"),
            vmem_limit_bytes=32 * 1024 * 1024,
        ),
    )(xf, wf)
    return out.reshape(N, C, H, W)


if __name__ == "__main__":
    key = jax.random.PRNGKey(0)
    kx, kw = jax.random.split(key)

    # Byte-valued inputs (values in [0, 256)), NCHW, kept in their native int32
    # dtype: no pre-cast pass, the kernel masks the wide dtype directly.
    x = jax.random.randint(kx, (2, 4, 16, 16), 0, 256, dtype=jnp.int32)
    w = jax.random.randint(kw, (1, 4, 16, 16), 0, 256, dtype=jnp.int32)

    # Pure-JAX reference of the PyTorch forward semantics.
    ref = jnp.logical_and((x >> BIT_I) & 1, (w >> BIT_J) & 1)

    # Tiny path (whole problem resident in VMEM, grid-less).
    out = jax.block_until_ready(logic_op(x, w))
    assert out.shape == ref.shape, (out.shape, ref.shape)
    assert out.dtype == jnp.bool_, out.dtype
    assert bool(jnp.all(out == ref)), "mismatch vs reference (tiny path)"

    # Also exercise the tiled (batch x feature) grid path on the same small
    # input by disabling the tiny-path gate.
    out_grid = jax.block_until_ready(logic_op(x, w, tiny_max_bytes=0))
    assert out_grid.dtype == jnp.bool_, out_grid.dtype
    assert bool(jnp.all(out_grid == ref)), "mismatch vs reference (grid path)"

    print("KERNEL_OK")
</pallas_src>

<mosaic_0001>
module attributes {stable_mosaic.version = 11 : i64} {
  func.func @logic_kernel(%arg0: memref<2x1024xi32, #tpu.memory_space<vmem>>, %arg1: memref<1x1024xi32, #tpu.memory_space<vmem>>, %arg2: memref<2x1024xi32, #tpu.memory_space<vmem>>) attributes {dimension_semantics = [], scalar_prefetch = 0 : i64, scratch_operands = 0 : i64, tpu.core_type = #tpu.core_type<tc>} {
    %c0 = arith.constant 0 : index
    %c0_0 = arith.constant 0 : index
    %0 = vector.load %arg0[%c0, %c0_0] : memref<2x1024xi32, #tpu.memory_space<vmem>>, vector<2x1024xi32>
    %c128_i32 = arith.constant 128 : i32
    %1 = vector.broadcast %c128_i32 : i32 to vector<2x1024xi32>
    %2 = arith.andi %0, %1 : vector<2x1024xi32>
    %c0_i32 = arith.constant 0 : i32
    %3 = vector.broadcast %c0_i32 : i32 to vector<2x1024xi32>
    %4 = arith.cmpi ne, %2, %3 : vector<2x1024xi32>
    %c0_1 = arith.constant 0 : index
    %c0_2 = arith.constant 0 : index
    %5 = vector.load %arg1[%c0_1, %c0_2] : memref<1x1024xi32, #tpu.memory_space<vmem>>, vector<1x1024xi32>
    %c64_i32 = arith.constant 64 : i32
    %6 = vector.broadcast %c64_i32 : i32 to vector<1x1024xi32>
    %7 = arith.andi %5, %6 : vector<1x1024xi32>
    %c0_i32_3 = arith.constant 0 : i32
    %8 = vector.broadcast %c0_i32_3 : i32 to vector<1x1024xi32>
    %9 = arith.cmpi ne, %7, %8 : vector<1x1024xi32>
    %10 = vector.broadcast %9 : vector<1x1024xi1> to vector<2x1024xi1>
    %11 = arith.andi %4, %10 : vector<2x1024xi1>
    %c0_4 = arith.constant 0 : index
    %c0_5 = arith.constant 0 : index
    %12 = vector.load %arg2[%c0_4, %c0_5] : memref<2x1024xi32, #tpu.memory_space<vmem>>, vector<2x1024xi32>
    %13 = arith.extui %11 : vector<2x1024xi1> to vector<2x1024xi32>
    %cst = arith.constant dense<0> : vector<2x1024xi32>
    %14 = arith.cmpi ne, %12, %cst : vector<2x1024xi32>
    tpu.vector_store %arg2[%c0_4, %c0_5], %13 {strides = array<i32>} : memref<2x1024xi32, #tpu.memory_space<vmem>>, vector<2x1024xi32>,
    return
  }
}

</mosaic_0001>

<llo_original>
// kernel: tpu_custom_call.1
$region0: #{tpu_custom_call.1}
  #allocation0 [shape = 'u32[]', space=smem, size = 0x4, offset = 0x4, fixed_abs, tag = 'smem constant byte address 0x4 - core index']
  #allocation1 [shape = 'u32[144,128]{1,0:T(1,128)}', space=vmem, size = 0x12000, scoped, tag = 'internal scratch']
  %s0 = inlined_call_operand.hbm [shape: s32[2,1024], index: 0, kind: input, shape index: {}]
  %s1 = inlined_call_operand.hbm [shape: s32[1,1024], index: 1, kind: input, shape index: {}]
  %s2 = inlined_call_operand.vmem [shape: s32[2,1024], index: 2, kind: output, shape index: {}]
  %s3 = sld [smem:[#allocation0]]
  $region26: #{tpu_custom_call.1} parent=0
    _
  %s5 = ssub.s32 1, %s3
  %s6 = scalar_select 0, %s5, %s3
  $region1: #{tpu_custom_call.1} parent=0
    #allocation2 [shape = 'u8[8192]{0}', space=vmem, size = 0x2000, scoped, tag = 'input window, operand 0, single buffered']
    #allocation3 [shape = 's32[1]{0}', space=sflag, size = 0x4, scoped, tag = 'scoped memory for tpu_custom_call.1']
    #allocation4 [shape = 'u8[4096]{0}', space=vmem, size = 0x1000, scoped, tag = 'input window, operand 1, single buffered']
    #allocation5 [shape = 's32[1]{0}', space=sflag, size = 0x4, scoped, tag = 'scoped memory for tpu_custom_call.1']
    %7 = vsyncpa [#allocation3], 0
    %8 = vsyncpa [#allocation5], 0
    // Predicated region
    $region2: #{tpu_custom_call.1} parent=1 // pred_check
      _
    $region3: #{tpu_custom_call.1} parent=1 // pred_check_branch
      %10 = sbr.rel (0) target = $region5
    $region4: #{tpu_custom_call.1} parent=1 // pred_region
      %s12 = ssub.s32 256, 256
      %13 = vsyncadd [#allocation3], %s12
      %s15 = sshll.u32 [#allocation2], 4
      %s16 = int_to_ptr.vmem [resolvable:$true] %s15
      %18 = dma.hbm_to_vmem [thread:$0]  %s0, 256, %s16, [#allocation3]
    $region5: #{tpu_custom_call.1} parent=1 // pred_fallthru
      _
    // Predicated region
    $region6: #{tpu_custom_call.1} parent=1 // pred_check
      _
    $region7: #{tpu_custom_call.1} parent=1 // pred_check_branch
      %20 = sbr.rel (0) target = $region9
    $region8: #{tpu_custom_call.1} parent=1 // pred_region
      %s22 = ssub.s32 128, 128
      %23 = vsyncadd [#allocation5], %s22
      %s25 = sshll.u32 [#allocation4], 4
      %s26 = int_to_ptr.vmem [resolvable:$true] %s25
      %28 = dma.hbm_to_vmem [thread:$0]  %s1, 128, %s26, [#allocation5]
    $region9: #{tpu_custom_call.1} parent=1 // pred_fallthru
      _
    // Predicated region
    $region10: #{tpu_custom_call.1} parent=1 // pred_check
      _
    $region11: #{tpu_custom_call.1} parent=1 // pred_check_branch
      %30 = sbr.rel (0) target = $region13
    $region12: #{tpu_custom_call.1} parent=1 // pred_region
      %31 = dma.done [#allocation3], 256
    $region13: #{tpu_custom_call.1} parent=1 // pred_fallthru
      _
    // Predicated region
    $region14: #{tpu_custom_call.1} parent=1 // pred_check
      _
    $region15: #{tpu_custom_call.1} parent=1 // pred_check_branch
      %33 = sbr.rel (0) target = $region17
    $region16: #{tpu_custom_call.1} parent=1 // pred_region
      %34 = dma.done [#allocation5], 128
    $region17: #{tpu_custom_call.1} parent=1 // pred_fallthru
      _
    %v35 = vld [vmem:[#allocation2] sm:$0xff]
    %v36 = vld [vmem:[#allocation2 + $0x8] sm:$0xff]
    %v37 = vand.u32 %v35, 128
    %v38 = vand.u32 %v36, 128
    %vm39 = vcmp.ne.s32.totalorder %v37, 0
    %vm40 = vcmp.ne.s32.totalorder %v38, 0
    %v41 = vld [vmem:[#allocation4] sm:$0xff]
    %v42 = vand.u32 %v41, 64
    %vm43 = vcmp.ne.s32.totalorder %v42, 0
    %v44 = vsel %vm43, 1, 0
    %v45 = vlaneseq
    %v46 = vshrl.u32 %v45, 7
    %v47 = vsub.s32 0, %v46
    %v48 = vrot.slane %v44, %v47
    %v49 = vlaneseq
    %v50 = vshrl.u32 %v49, 7
    %v51 = vsub.s32 1, %v50
    %v52 = vrot.slane %v44, %v51
    %v53 = vlaneseq
    %v54 = vshrl.u32 %v53, 7
    %v55 = vsub.s32 2, %v54
    %v56 = vrot.slane %v44, %v55
    %v57 = vlaneseq
    %v58 = vshrl.u32 %v57, 7
    %v59 = vsub.s32 3, %v58
    %v60 = vrot.slane %v44, %v59
    %v61 = vlaneseq
    %v62 = vshrl.u32 %v61, 7
    %v63 = vsub.s32 4, %v62
    %v64 = vrot.slane %v44, %v63
    %v65 = vlaneseq
    %v66 = vshrl.u32 %v65, 7
    %v67 = vsub.s32 5, %v66
    %v68 = vrot.slane %v44, %v67
    %v69 = vlaneseq
    %v70 = vshrl.u32 %v69, 7
    %v71 = vsub.s32 6, %v70
    %v72 = vrot.slane %v44, %v71
    %v73 = vlaneseq
    %v74 = vshrl.u32 %v73, 7
    %v75 = vsub.s32 7, %v74
    %v76 = vrot.slane %v44, %v75
    %vm77 = vcmp.eq.s32.totalorder %v48, 1
    %vm78 = vcmp.eq.s32.totalorder %v52, 1
    %vm79 = vcmp.eq.s32.totalorder %v56, 1
    %vm80 = vcmp.eq.s32.totalorder %v60, 1
    %vm81 = vcmp.eq.s32.totalorder %v64, 1
    %vm82 = vcmp.eq.s32.totalorder %v68, 1
    %vm83 = vcmp.eq.s32.totalorder %v72, 1
    %vm84 = vcmp.eq.s32.totalorder %v76, 1
    %v85 = vsel %vm77, 1, 0
    %v86 = vsel %vm78, 1, 0
    %v87 = vsel %vm79, 1, 0
    %v88 = vsel %vm80, 1, 0
    %v89 = vsel %vm81, 1, 0
    %v90 = vsel %vm82, 1, 0
    %v91 = vsel %vm83, 1, 0
    %v92 = vsel %vm84, 1, 0
    %v93 = vcombine.low %v85, %v86
    %v94 = vcombine.low %v87, %v88
    %v96 = vunpack.c.l.s4 1983009808
    %v97 = vunpack.c.0.s8 %v96
    %v98 = vlaneseq
    %v99 = vshrl.u32 %v98, 7
    %v100 = vsub.s32 %v97, %v99
    %v101 = vrot.slane %v93, %v100
    %v103 = vunpack.c.l.s4 1983009808
    %v104 = vunpack.c.0.s8 %v103
    %v105 = vlaneseq
    %v106 = vshrl.u32 %v105, 7
    %v107 = vsub.s32 %v104, %v106
    %v108 = vrot.slane %v94, %v107
    %v109 = vcombine.low %v101, %v108
    %v110 = vcombine.low %v89, %v90
    %v111 = vcombine.low %v91, %v92
    %v113 = vunpack.c.l.s4 1983009808
    %v114 = vunpack.c.0.s8 %v113
    %v115 = vlaneseq
    %v116 = vshrl.u32 %v115, 7
    %v117 = vsub.s32 %v114, %v116
    %v118 = vrot.slane %v110, %v117
    %v120 = vunpack.c.l.s4 1983009808
    %v121 = vunpack.c.0.s8 %v120
    %v122 = vlaneseq
    %v123 = vshrl.u32 %v122, 7
    %v124 = vsub.s32 %v121, %v123
    %v125 = vrot.slane %v111, %v124
    %v126 = vcombine.low %v118, %v125
    %vm127 = vcmp.ne.s32.totalorder %v109, 0
    %vm128 = vcmp.ne.s32.totalorder %v126, 0
    %vm129 = vmand %vm39, %vm127
    %vm130 = vmand %vm40, %vm128
    %v131 = vsel %vm129, 1, 0
    %v132 = vsel %vm130, 1, 0
    %133 = vst [vmem:[%s2] sm:$0xff] %v131
    %134 = vst [vmem:[%s2 + $0x8] sm:$0xff] %v132
    // Predicated region
    $region18: #{tpu_custom_call.1} parent=1 // pred_check
      _
    $region19: #{tpu_custom_call.1} parent=1 // pred_check_branch
      %136 = sbr.rel (0) target = $region21
    $region20: #{tpu_custom_call.1} parent=1 // pred_region
      _
    $region21: #{tpu_custom_call.1} parent=1 // pred_fallthru
      _
    // Predicated region
    $region22: #{tpu_custom_call.1} parent=1 // pred_check
      _
    $region23: #{tpu_custom_call.1} parent=1 // pred_check_branch
      %138 = sbr.rel (0) target = $region25
    $region24: #{tpu_custom_call.1} parent=1 // pred_region
      _
    $region25: #{tpu_custom_call.1} parent=1 // pred_fallthru
      _
    %139 = vsyncpa [#allocation3], 1
    %140 = vsyncpa [#allocation5], 1

</llo_original>
